<compile_context>
chip_gen: v7x
topology: tpu7x:2x2x1
jax: 0.10.0
libtpu: 0.0.40
codegen_flags: <defaults>
</compile_context>

<pallas_src>
import math
import functools

import jax
import jax.numpy as jnp
from jax.experimental import pallas as pl
from jax.experimental.pallas import tpu as pltpu  # noqa: F401  (grid-less kernel; kept for completeness)


# ----------------------------------------------------------------------------- kernel

def _trans_encoder_kernel(xu_ref, w_ref, vec_ref, o_ref, *, n, s, d, cin3, eps):
    r = n * s  # number of flattened (l, b) rows

    # ---- static slices of the two packed, lane-dense parameter slabs ----
    wqkv = w_ref[0:d, 0:3 * d]               # (D, 3D)  columns ordered q|k|v
    wo = w_ref[d:2 * d, 0:d]                 # (D, D)   attention output projection
    w12 = w_ref[2 * d:3 * d, 0:d]            # (D, D)   folded (linear) FFN
    wf = w_ref[3 * d:3 * d + cin3, 0:d]      # (3*Cin, D) circular-conv unfold weights

    bqkv = vec_ref[0:1, 0:3 * d]             # (1, 3D)
    bo = vec_ref[1:2, 0:d]
    b12 = vec_ref[2:3, 0:d]
    g1, be1 = vec_ref[3:4, 0:d], vec_ref[4:5, 0:d]
    g2, be2 = vec_ref[5:6, 0:d], vec_ref[6:7, 0:d]
    pe_b = vec_ref[8:8 + r, 0:d]             # (R, D)  positional enc. + conv bias

    # ---- circular Conv1d token embedding == one MXU matmul (bias/PE pre-folded) ----
    h = jnp.dot(xu_ref[...], wf, preferred_element_type=jnp.float32) + pe_b   # (R, D)

    # ---- fused QKV projection: one MXU pass, (R, 3D) result ----
    hb = h.astype(jnp.bfloat16)
    qkv = jnp.dot(hb, wqkv, preferred_element_type=jnp.float32) + bqkv
    q, k, v = qkv[:, 0:d], qkv[:, d:2 * d], qkv[:, 2 * d:3 * d]

    # ---- self-attention: nhead == d_model -> head_dim == 1, scores are q*k ----
    # Rows are l-major (l, b); valid keys share the same l and are causal in b.
    if s == 1:
        attn_out = v
    elif s == 2:
        # Closed-form 2-key softmax: keys are b'=0 (block start) and b'=b (self).
        # Block-start rows are gathered with an exact one-hot MXU matmul.
        ri = jax.lax.broadcasted_iota(jnp.int32, (r, r), 0)
        ci = jax.lax.broadcasted_iota(jnp.int32, (r, r), 1)
        sel = (ci == (ri - ri % s)).astype(jnp.float32)           # (R, R) one-hot
        k0 = jnp.dot(sel, k, preferred_element_type=jnp.float32)  # block-start key
        v0 = jnp.dot(sel, v, preferred_element_type=jnp.float32)  # block-start value
        # softmax over {block-start, self}: weight(self) = sigmoid(q*k - q*k0);
        # b == 0 rows degenerate correctly (k0 == k, v0 == v  ->  out == v).
        w_self = jax.nn.sigmoid(q * (k - k0))
        attn_out = v0 + w_self * (v - v0)                         # (R, D)
    else:
        # Dense masked-softmax fallback (block-diagonal over l, causal over b).
        # TODO(synk): tile over the key axis (online softmax) before scaling R.
        ri = jax.lax.broadcasted_iota(jnp.int32, (r, r), 0)
        ci = jax.lax.broadcasted_iota(jnp.int32, (r, r), 1)
        keep = ((ri // s) == (ci // s)) & (ci <= ri)
        scores = jnp.where(keep[:, :, None], q[:, None, :] * k[None, :, :], -1e30)
        m = jnp.max(scores, axis=1, keepdims=True)
        p = jnp.exp(scores - m)
        attn = p * pl.reciprocal(jnp.sum(p, axis=1, keepdims=True), approx=True)
        attn_out = jnp.sum(attn * v[None, :, :], axis=1)

    src2 = jnp.dot(attn_out.astype(jnp.bfloat16), wo,
                   preferred_element_type=jnp.float32) + bo

    # ---- residual + LayerNorm 1 (dropouts are identity at inference) ----
    h1 = h + src2
    mu1 = jnp.mean(h1, axis=-1, keepdims=True)
    var1 = jnp.mean((h1 - mu1) ** 2, axis=-1, keepdims=True)
    h1n = (h1 - mu1) * jax.lax.rsqrt(var1 + eps) * g1 + be1

    # ---- folded feed-forward: LeakyReLU(True) -> slope 1.0 -> identity, so one matmul ----
    f2 = jnp.dot(h1n.astype(jnp.bfloat16), w12,
                 preferred_element_type=jnp.float32) + b12

    # ---- residual + LayerNorm 2; single (R, D) f32 store ----
    h2 = h1n + f2
    mu2 = jnp.mean(h2, axis=-1, keepdims=True)
    var2 = jnp.mean((h2 - mu2) ** 2, axis=-1, keepdims=True)
    o_ref[...] = (h2 - mu2) * jax.lax.rsqrt(var2 + eps) * g2 + be2


# ----------------------------------------------------------------------------- packing (one-time)

def _pack_params(params, batch, length):
    """One-time packing of every parameter into two lane-dense slabs."""
    D = params["conv_w"].shape[0]
    Cin = params["conv_w"].shape[1]              # 2 * num_inputs
    S, N = batch, length
    nhead = D                                    # Trans_encoder uses nhead == feature_size
    scale = 1.0 / math.sqrt(D // nhead)          # == 1.0 (head_dim == 1); kept for generality
    width = max(128, -(-3 * D // 128) * 128)     # lane-dense slab width

    # --- weight slab (bf16): row blocks [Wqkv | Wo | W12 | Wf], padded to `width` cols ---
    wq, wk, wv = jnp.split(params["in_proj_w"], 3, axis=0)
    wqkv = jnp.concatenate([wq.T * scale, wk.T, wv.T], axis=1)        # (D, 3D)
    wo = params["out_w"].T                                            # (D, D)
    w12 = params["w1"].T @ params["w2"].T                             # (D, D) folded FFN (f32)
    wf = params["conv_w"].transpose(2, 1, 0).reshape(3 * Cin, D)      # Wf[k*Cin + c, d] = w[d, c, k]
    wf_rows = -(-3 * Cin // 8) * 8

    def blk(mat, rows):
        return jnp.pad(mat, ((0, rows - mat.shape[0]), (0, width - mat.shape[1])))

    w_slab = jnp.concatenate(
        [blk(wqkv, D), blk(wo, D), blk(w12, D), blk(wf, wf_rows)],
        axis=0).astype(jnp.bfloat16)

    # --- vector slab (f32): biases, LN params, PE (+ conv bias folded in) ---
    bq, bk, bv = jnp.split(params["in_proj_b"], 3)
    bqkv = jnp.concatenate([bq * scale, bk, bv])                      # (3D,)
    b12 = params["b1"] @ params["w2"].T + params["b2"]                # folded FFN bias (f32)
    pe_b = jnp.tile(params["pe"][:S], (N, 1)) + params["conv_b"][None, :]   # row l*S+b -> pe[b]+conv_b

    def vrow(vec):
        return jnp.pad(vec, (0, width - vec.shape[0])).reshape(1, width)

    vec_slab = jnp.concatenate(
        [vrow(bqkv), vrow(params["out_b"]), vrow(b12),
         vrow(params["g1"]), vrow(params["b1n"]),
         vrow(params["g2"]), vrow(params["b2n"]),
         jnp.zeros((1, width), jnp.float32),                          # pad header to 8 rows
         jnp.pad(pe_b, ((0, 0), (0, width - D)))],
        axis=0).astype(jnp.float32)
    return w_slab, vec_slab


# ----------------------------------------------------------------------------- wrapper

def make_trans_encoder_forward(params, batch, length):
    """Packs all parameters ONCE; returns a jitted forward(src, c) -> (L, D, B).

    Per-call XLA work is only the circular k=3 unfold of (src, c); everything else
    runs inside a single grid-less pallas_call with 3 input DMAs and 1 output DMA.
    """
    D = params["conv_w"].shape[0]
    Cin = params["conv_w"].shape[1]
    S, N = batch, length                  # transformer: sequence axis = B, batch axis = L
    R = N * S
    w_slab, vec_slab = _pack_params(params, batch, length)
    kernel = functools.partial(_trans_encoder_kernel,
                               n=N, s=S, d=D, cin3=3 * Cin, eps=1e-5)
    call = pl.pallas_call(kernel, out_shape=jax.ShapeDtypeStruct((R, D), jnp.float32))

    @jax.jit
    def forward(src, c):
        # circular k=3 unfold of the channel-concatenated input, l-major rows:
        #   xu[l*B + b, k*Cin + cc] = x[b, cc, (l - 1 + k) mod L]
        x = jnp.concatenate([src, c], axis=1)                                     # (B, Cin, L)
        xu = jnp.concatenate([jnp.roll(x, 1, axis=-1), x, jnp.roll(x, -1, axis=-1)], axis=1)
        xu = xu.transpose(2, 0, 1).reshape(R, 3 * Cin).astype(jnp.bfloat16)       # (R, 3*Cin)
        out_flat = call(xu, w_slab, vec_slab)                                     # (R, D)
        # rows are l-major (l, b); torch: output (B, L, D).permute(1, 2, 0) -> (L, D, B)
        return out_flat.reshape(N, S, D).transpose(0, 2, 1)

    return forward


# ----------------------------------------------------------------------------- params

def positional_encoding_table(max_len, d_model):
    pos = jnp.arange(max_len, dtype=jnp.float32)[:, None]
    div = jnp.exp(jnp.arange(0, d_model, 2, dtype=jnp.float32)
                  * (-math.log(10000.0) / d_model))
    pe = jnp.zeros((max_len, d_model), jnp.float32)
    pe = pe.at[:, 0::2].set(jnp.sin(pos * div))
    pe = pe.at[:, 1::2].set(jnp.cos(pos * div))
    return pe


def init_params(key, num_inputs, d_model, dff=16, max_len=64):
    c_in = 2 * num_inputs
    ks = jax.random.split(key, 8)

    def nrm(k, shape, scale):
        return (scale * jax.random.normal(k, shape)).astype(jnp.float32)

    return {
        "conv_w": nrm(ks[0], (d_model, c_in, 3), 1.0 / math.sqrt(c_in * 3)),
        "conv_b": nrm(ks[1], (d_model,), 0.02),
        "in_proj_w": nrm(ks[2], (3 * d_model, d_model), 1.0 / math.sqrt(d_model)),
        "in_proj_b": nrm(ks[3], (3 * d_model,), 0.02),
        "out_w": nrm(ks[4], (d_model, d_model), 1.0 / math.sqrt(d_model)),
        "out_b": jnp.zeros((d_model,), jnp.float32),
        "w1": nrm(ks[5], (dff, d_model), 1.0 / math.sqrt(d_model)),
        "b1": nrm(ks[6], (dff,), 0.02),
        "w2": nrm(ks[7], (d_model, dff), 1.0 / math.sqrt(dff)),
        "b2": jnp.zeros((d_model,), jnp.float32),
        "g1": jnp.ones((d_model,), jnp.float32),
        "b1n": jnp.zeros((d_model,), jnp.float32),
        "g2": jnp.ones((d_model,), jnp.float32),
        "b2n": jnp.zeros((d_model,), jnp.float32),
        "pe": positional_encoding_table(max_len, d_model),
    }


# ----------------------------------------------------------------------------- pure-JAX reference

def _ln(x, g, b, eps=1e-5):
    mu = jnp.mean(x, -1, keepdims=True)
    var = jnp.mean((x - mu) ** 2, -1, keepdims=True)
    return (x - mu) / jnp.sqrt(var + eps) * g + b


def reference_forward(src, c, params, nhead, matmul_dtype=jnp.float32):
    # matmul_dtype=bfloat16 mirrors the kernel's precision policy (bf16 MXU operands,
    # f32 accumulation); matmul_dtype=float32 is the faithful f32 path.
    def mm(eq, a, b):
        return jnp.einsum(eq, a.astype(matmul_dtype), b.astype(matmul_dtype),
                          preferred_element_type=jnp.float32)

    D = params["conv_w"].shape[0]
    x = jnp.concatenate([src, c], axis=1)
    B, _, L = x.shape
    xp = jnp.concatenate([x[..., -1:], x, x[..., :1]], axis=-1)         # circular pad
    xw = jnp.stack([xp[..., k:k + L] for k in range(3)], axis=-1)       # (B, Cin, L, 3)
    y = mm("bclk,dck->bdl", xw, params["conv_w"]) + params["conv_b"][None, :, None]
    h = y.transpose(2, 0, 1).transpose(1, 0, 2)                         # (B, L, D): seq=B, batch=L
    h = h + params["pe"][:B][:, None, :]
    S, N, _ = h.shape
    mask = jnp.where(jnp.tril(jnp.ones((S, S))) > 0, 0.0, -1e30)
    wq, wk, wv = jnp.split(params["in_proj_w"], 3, axis=0)
    bq, bk, bv = jnp.split(params["in_proj_b"], 3)
    hd = D // nhead
    q = (mm("snd,ed->sne", h, wq) + bq) / math.sqrt(hd)
    k = mm("snd,ed->sne", h, wk) + bk
    v = mm("snd,ed->sne", h, wv) + bv
    qh, kh, vh = (t.reshape(S, N, nhead, hd) for t in (q, k, v))
    scores = jnp.einsum("inhd,jnhd->nhij", qh, kh) + mask[None, None]
    attn = jax.nn.softmax(scores, axis=-1)
    ao = jnp.einsum("nhij,jnhd->inhd", attn, vh).reshape(S, N, D)
    src2 = mm("snd,ed->sne", ao, params["out_w"]) + params["out_b"]
    h1 = _ln(h + src2, params["g1"], params["b1n"])
    f = mm("snd,fd->snf", h1, params["w1"]) + params["b1"]
    f = jnp.where(f >= 0.0, f, 1.0 * f)                                 # LeakyReLU(slope=1.0)
    f2 = mm("snf,df->snd", f, params["w2"]) + params["b2"]
    h2 = _ln(h1 + f2, params["g2"], params["b2n"])
    return h2.transpose(1, 2, 0)                                        # (L, D, B)


# ----------------------------------------------------------------------------- main

if __name__ == "__main__":
    B, C, L, D = 2, 4, 8, 32   # batch, num_inputs, seq length, feature_size
    key = jax.random.PRNGKey(0)
    k_src, k_c, k_par = jax.random.split(key, 3)
    src = jax.random.normal(k_src, (B, C, L), jnp.float32)
    cond = jax.random.normal(k_c, (B, C, L), jnp.float32)
    params = init_params(k_par, num_inputs=C, d_model=D)

    forward = make_trans_encoder_forward(params, batch=B, length=L)    # one-time packing
    out = jax.block_until_ready(forward(src, cond))
    assert out.shape == (L, D, B), out.shape

    # Check against a reference using the kernel's precision policy (bf16 matmul
    # operands, f32 accumulation).  Slightly looser than exact-op-order matching
    # because the kernel folds the (linear) FFN into one pre-multiplied matrix,
    # which changes bf16 rounding order (algebraically exact in f32).
    ref_policy = reference_forward(src, cond, params, nhead=D, matmul_dtype=jnp.bfloat16)
    assert bool(jnp.allclose(out, ref_policy, rtol=3e-2, atol=3e-2)), \
        "mismatch vs bf16-policy reference"
    # Loose sanity bound against the pure-f32 reference: only precision-policy
    # (bf16 vs f32 operands) differences remain, not implementation error.
    ref_f32 = reference_forward(src, cond, params, nhead=D)
    assert bool(jnp.allclose(out, ref_f32, rtol=1.5e-1, atol=1.5e-1)), \
        "mismatch vs f32 reference"
    print("KERNEL_OK")
</pallas_src>

<mosaic_0001>
module attributes {stable_mosaic.version = 11 : i64} {
  func.func @_trans_encoder_kernel(%arg0: memref<16x24xbf16, #tpu.memory_space<vmem>>, %arg1: memref<120x128xbf16, #tpu.memory_space<vmem>>, %arg2: memref<24x128xf32, #tpu.memory_space<vmem>>, %arg3: memref<16x32xf32, #tpu.memory_space<vmem>>) attributes {dimension_semantics = [], scalar_prefetch = 0 : i64, scratch_operands = 0 : i64, tpu.core_type = #tpu.core_type<tc>} {
    %c0 = arith.constant 0 : index
    %c0_0 = arith.constant 0 : index
    %0 = vector.load %arg1[%c0, %c0_0] : memref<120x128xbf16, #tpu.memory_space<vmem>>, vector<32x96xbf16>
    %c32 = arith.constant 32 : index
    %c0_1 = arith.constant 0 : index
    %1 = vector.load %arg1[%c32, %c0_1] : memref<120x128xbf16, #tpu.memory_space<vmem>>, vector<32x32xbf16>
    %c64 = arith.constant 64 : index
    %c0_2 = arith.constant 0 : index
    %2 = vector.load %arg1[%c64, %c0_2] : memref<120x128xbf16, #tpu.memory_space<vmem>>, vector<32x32xbf16>
    %c96 = arith.constant 96 : index
    %c0_3 = arith.constant 0 : index
    %3 = vector.load %arg1[%c96, %c0_3] : memref<120x128xbf16, #tpu.memory_space<vmem>>, vector<24x32xbf16>
    %c0_4 = arith.constant 0 : index
    %c0_5 = arith.constant 0 : index
    %4 = vector.load %arg2[%c0_4, %c0_5] : memref<24x128xf32, #tpu.memory_space<vmem>>, vector<1x96xf32>
    %c1 = arith.constant 1 : index
    %c0_6 = arith.constant 0 : index
    %5 = vector.load %arg2[%c1, %c0_6] : memref<24x128xf32, #tpu.memory_space<vmem>>, vector<1x32xf32>
    %c2 = arith.constant 2 : index
    %c0_7 = arith.constant 0 : index
    %6 = vector.load %arg2[%c2, %c0_7] : memref<24x128xf32, #tpu.memory_space<vmem>>, vector<1x32xf32>
    %c3 = arith.constant 3 : index
    %c0_8 = arith.constant 0 : index
    %7 = vector.load %arg2[%c3, %c0_8] : memref<24x128xf32, #tpu.memory_space<vmem>>, vector<1x32xf32>
    %c4 = arith.constant 4 : index
    %c0_9 = arith.constant 0 : index
    %8 = vector.load %arg2[%c4, %c0_9] : memref<24x128xf32, #tpu.memory_space<vmem>>, vector<1x32xf32>
    %c5 = arith.constant 5 : index
    %c0_10 = arith.constant 0 : index
    %9 = vector.load %arg2[%c5, %c0_10] : memref<24x128xf32, #tpu.memory_space<vmem>>, vector<1x32xf32>
    %c6 = arith.constant 6 : index
    %c0_11 = arith.constant 0 : index
    %10 = vector.load %arg2[%c6, %c0_11] : memref<24x128xf32, #tpu.memory_space<vmem>>, vector<1x32xf32>
    %c8 = arith.constant 8 : index
    %c0_12 = arith.constant 0 : index
    %11 = vector.load %arg2[%c8, %c0_12] : memref<24x128xf32, #tpu.memory_space<vmem>>, vector<16x32xf32>
    %c0_13 = arith.constant 0 : index
    %c0_14 = arith.constant 0 : index
    %12 = vector.load %arg0[%c0_13, %c0_14] : memref<16x24xbf16, #tpu.memory_space<vmem>>, vector<16x24xbf16>
    %cst = arith.constant dense<0.000000e+00> : vector<16x32xf32>
    %13 = tpu.matmul %12, %3, %cst {dimension_numbers = #tpu.dot_dimension_numbers<[1], [0], [0], [1], [0, 0, 1, 1], [], []>} : vector<16x24xbf16>, vector<24x32xbf16>, vector<16x32xf32> -> vector<16x32xf32>
    %14 = arith.addf %13, %11 : vector<16x32xf32>
    %15 = arith.truncf %14 : vector<16x32xf32> to vector<16x32xbf16>
    %cst_15 = arith.constant dense<0.000000e+00> : vector<16x96xf32>
    %16 = tpu.matmul %15, %0, %cst_15 {dimension_numbers = #tpu.dot_dimension_numbers<[1], [0], [0], [1], [0, 0, 1, 1], [], []>} : vector<16x32xbf16>, vector<32x96xbf16>, vector<16x96xf32> -> vector<16x96xf32>
    %17 = vector.broadcast %4 : vector<1x96xf32> to vector<16x96xf32>
    %18 = arith.addf %16, %17 : vector<16x96xf32>
    %19 = vector.extract_strided_slice %18 {offsets = [0, 0], sizes = [16, 32], strides = [1, 1]} : vector<16x96xf32> to vector<16x32xf32>
    %20 = vector.extract_strided_slice %18 {offsets = [0, 32], sizes = [16, 32], strides = [1, 1]} : vector<16x96xf32> to vector<16x32xf32>
    %21 = vector.extract_strided_slice %18 {offsets = [0, 64], sizes = [16, 32], strides = [1, 1]} : vector<16x96xf32> to vector<16x32xf32>
    %22 = tpu.iota {dimensions = array<i32: 0>} : vector<16x16xi32>
    %23 = tpu.iota {dimensions = array<i32: 1>} : vector<16x16xi32>
    %c2_i32 = arith.constant 2 : i32
    %c0_i32 = arith.constant 0 : i32
    %24 = arith.cmpi eq, %c2_i32, %c0_i32 : i32
    %c1_i32 = arith.constant 1 : i32
    %25 = arith.select %24, %c1_i32, %c2_i32 : i32
    %26 = vector.broadcast %25 : i32 to vector<16x16xi32>
    %27 = arith.remsi %22, %26 : vector<16x16xi32>
    %c0_i32_16 = arith.constant 0 : i32
    %28 = vector.broadcast %c0_i32_16 : i32 to vector<16x16xi32>
    %29 = arith.cmpi ne, %27, %28 : vector<16x16xi32>
    %c0_i32_17 = arith.constant 0 : i32
    %30 = vector.broadcast %c0_i32_17 : i32 to vector<16x16xi32>
    %31 = arith.cmpi slt, %27, %30 : vector<16x16xi32>
    %c0_i32_18 = arith.constant 0 : i32
    %32 = arith.cmpi slt, %25, %c0_i32_18 : i32
    %33 = vector.broadcast %32 : i1 to vector<16x16xi1>
    %34 = vector.broadcast %33 : vector<16x16xi1> to vector<16x16xi1>
    %35 = arith.xori %31, %34 : vector<16x16xi1>
    %36 = arith.andi %35, %29 : vector<16x16xi1>
    %37 = vector.broadcast %25 : i32 to vector<16x16xi32>
    %38 = arith.addi %27, %37 : vector<16x16xi32>
    %39 = arith.select %36, %38, %27 : vector<16x16xi1>, vector<16x16xi32>
    %40 = arith.subi %22, %39 : vector<16x16xi32>
    %41 = arith.cmpi eq, %23, %40 : vector<16x16xi32>
    %42 = arith.extui %41 : vector<16x16xi1> to vector<16x16xi32>
    %43 = arith.sitofp %42 : vector<16x16xi32> to vector<16x16xf32>
    %cst_19 = arith.constant dense<0.000000e+00> : vector<16x32xf32>
    %44 = tpu.matmul %43, %20, %cst_19 {dimension_numbers = #tpu.dot_dimension_numbers<[1], [0], [0], [1], [0, 0, 1, 1], [], []>} : vector<16x16xf32>, vector<16x32xf32>, vector<16x32xf32> -> vector<16x32xf32>
    %cst_20 = arith.constant dense<0.000000e+00> : vector<16x32xf32>
    %45 = tpu.matmul %43, %21, %cst_20 {dimension_numbers = #tpu.dot_dimension_numbers<[1], [0], [0], [1], [0, 0, 1, 1], [], []>} : vector<16x16xf32>, vector<16x32xf32>, vector<16x32xf32> -> vector<16x32xf32>
    %46 = arith.subf %20, %44 : vector<16x32xf32>
    %47 = arith.mulf %19, %46 : vector<16x32xf32>
    %48 = arith.negf %47 : vector<16x32xf32>
    %49 = math.exp %48 : vector<16x32xf32>
    %cst_21 = arith.constant 1.000000e+00 : f32
    %50 = vector.broadcast %cst_21 : f32 to vector<16x32xf32>
    %51 = arith.addf %50, %49 : vector<16x32xf32>
    %52 = arith.divf %50, %51 : vector<16x32xf32>
    %53 = arith.subf %21, %45 : vector<16x32xf32>
    %54 = arith.mulf %52, %53 : vector<16x32xf32>
    %55 = arith.addf %45, %54 : vector<16x32xf32>
    %56 = arith.truncf %55 : vector<16x32xf32> to vector<16x32xbf16>
    %cst_22 = arith.constant dense<0.000000e+00> : vector<16x32xf32>
    %57 = tpu.matmul %56, %1, %cst_22 {dimension_numbers = #tpu.dot_dimension_numbers<[1], [0], [0], [1], [0, 0, 1, 1], [], []>} : vector<16x32xbf16>, vector<32x32xbf16>, vector<16x32xf32> -> vector<16x32xf32>
    %58 = vector.broadcast %5 : vector<1x32xf32> to vector<16x32xf32>
    %59 = arith.addf %57, %58 : vector<16x32xf32>
    %60 = arith.addf %14, %59 : vector<16x32xf32>
    %cst_23 = arith.constant dense<0.000000e+00> : vector<16xf32>
    %61 = vector.multi_reduction <add>, %60, %cst_23 [1] : vector<16x32xf32> to vector<16xf32>
    %62 = vector.shape_cast %61 : vector<16xf32> to vector<16x1xf32>
    %cst_24 = arith.constant 3.200000e+01 : f32
    %63 = vector.broadcast %cst_24 : f32 to vector<16x1xf32>
    %64 = arith.divf %62, %63 : vector<16x1xf32>
    %65 = vector.broadcast %64 : vector<16x1xf32> to vector<16x32xf32>
    %66 = arith.subf %60, %65 : vector<16x32xf32>
    %67 = arith.mulf %66, %66 : vector<16x32xf32>
    %cst_25 = arith.constant dense<0.000000e+00> : vector<16xf32>
    %68 = vector.multi_reduction <add>, %67, %cst_25 [1] : vector<16x32xf32> to vector<16xf32>
    %69 = vector.shape_cast %68 : vector<16xf32> to vector<16x1xf32>
    %cst_26 = arith.constant 3.200000e+01 : f32
    %70 = vector.broadcast %cst_26 : f32 to vector<16x1xf32>
    %71 = arith.divf %69, %70 : vector<16x1xf32>
    %72 = vector.broadcast %64 : vector<16x1xf32> to vector<16x32xf32>
    %73 = arith.subf %60, %72 : vector<16x32xf32>
    %cst_27 = arith.constant 9.99999974E-6 : f32
    %74 = vector.broadcast %cst_27 : f32 to vector<16x1xf32>
    %75 = arith.addf %71, %74 : vector<16x1xf32>
    %76 = math.rsqrt %75 : vector<16x1xf32>
    %77 = vector.broadcast %76 : vector<16x1xf32> to vector<16x32xf32>
    %78 = arith.mulf %73, %77 : vector<16x32xf32>
    %79 = vector.broadcast %7 : vector<1x32xf32> to vector<16x32xf32>
    %80 = arith.mulf %78, %79 : vector<16x32xf32>
    %81 = vector.broadcast %8 : vector<1x32xf32> to vector<16x32xf32>
    %82 = arith.addf %80, %81 : vector<16x32xf32>
    %83 = arith.truncf %82 : vector<16x32xf32> to vector<16x32xbf16>
    %cst_28 = arith.constant dense<0.000000e+00> : vector<16x32xf32>
    %84 = tpu.matmul %83, %2, %cst_28 {dimension_numbers = #tpu.dot_dimension_numbers<[1], [0], [0], [1], [0, 0, 1, 1], [], []>} : vector<16x32xbf16>, vector<32x32xbf16>, vector<16x32xf32> -> vector<16x32xf32>
    %85 = vector.broadcast %6 : vector<1x32xf32> to vector<16x32xf32>
    %86 = arith.addf %84, %85 : vector<16x32xf32>
    %87 = arith.addf %82, %86 : vector<16x32xf32>
    %cst_29 = arith.constant dense<0.000000e+00> : vector<16xf32>
    %88 = vector.multi_reduction <add>, %87, %cst_29 [1] : vector<16x32xf32> to vector<16xf32>
    %89 = vector.shape_cast %88 : vector<16xf32> to vector<16x1xf32>
    %cst_30 = arith.constant 3.200000e+01 : f32
    %90 = vector.broadcast %cst_30 : f32 to vector<16x1xf32>
    %91 = arith.divf %89, %90 : vector<16x1xf32>
    %92 = vector.broadcast %91 : vector<16x1xf32> to vector<16x32xf32>
    %93 = arith.subf %87, %92 : vector<16x32xf32>
    %94 = arith.mulf %93, %93 : vector<16x32xf32>
    %cst_31 = arith.constant dense<0.000000e+00> : vector<16xf32>
    %95 = vector.multi_reduction <add>, %94, %cst_31 [1] : vector<16x32xf32> to vector<16xf32>
    %96 = vector.shape_cast %95 : vector<16xf32> to vector<16x1xf32>
    %cst_32 = arith.constant 3.200000e+01 : f32
    %97 = vector.broadcast %cst_32 : f32 to vector<16x1xf32>
    %98 = arith.divf %96, %97 : vector<16x1xf32>
    %99 = vector.broadcast %91 : vector<16x1xf32> to vector<16x32xf32>
    %100 = arith.subf %87, %99 : vector<16x32xf32>
    %cst_33 = arith.constant 9.99999974E-6 : f32
    %101 = vector.broadcast %cst_33 : f32 to vector<16x1xf32>
    %102 = arith.addf %98, %101 : vector<16x1xf32>
    %103 = math.rsqrt %102 : vector<16x1xf32>
    %104 = vector.broadcast %103 : vector<16x1xf32> to vector<16x32xf32>
    %105 = arith.mulf %100, %104 : vector<16x32xf32>
    %106 = vector.broadcast %9 : vector<1x32xf32> to vector<16x32xf32>
    %107 = arith.mulf %105, %106 : vector<16x32xf32>
    %108 = vector.broadcast %10 : vector<1x32xf32> to vector<16x32xf32>
    %109 = arith.addf %107, %108 : vector<16x32xf32>
    %c0_34 = arith.constant 0 : index
    %c0_35 = arith.constant 0 : index
    %110 = vector.load %arg3[%c0_34, %c0_35] : memref<16x32xf32, #tpu.memory_space<vmem>>, vector<16x32xf32>
    tpu.vector_store %arg3[%c0_34, %c0_35], %109 {strides = array<i32>} : memref<16x32xf32, #tpu.memory_space<vmem>>, vector<16x32xf32>,
    return
  }
}

</mosaic_0001>

<llo_original>
// kernel: forward.1
$region0: #{forward.1}
  #allocation0 [shape = 'u32[]', space=smem, size = 0x4, offset = 0x4, fixed_abs, tag = 'smem constant byte address 0x4 - core index']
  #allocation1 [shape = 'u32[144,128]{1,0:T(1,128)}', space=vmem, size = 0x12000, scoped, tag = 'internal scratch']
  %s0 = inlined_call_operand.vmem [shape: bf16[16,24], index: 0, kind: input, shape index: {}]
  %s1 = inlined_call_operand.vmem [shape: bf16[120,128], index: 1, kind: input, shape index: {}]
  %s2 = inlined_call_operand.vmem [shape: f32[24,128], index: 2, kind: input, shape index: {}]
  %s3 = inlined_call_operand.hbm [shape: f32[16,32], index: 3, kind: output, shape index: {}]
  %s4 = sld [smem:[#allocation0]]
  $region22: #{forward.1} parent=0
    _
  %s6 = ssub.s32 1, %s4
  %s7 = scalar_select 0, %s6, %s4
  $region1: #{forward.1} parent=0
    #allocation2 [shape = 'u8[8192]{0}', space=vmem, size = 0x2000, scoped, tag = 'output window, operand 0, single buffered']
    #allocation3 [shape = 's32[1]{0}', space=sflag, size = 0x4, scoped, tag = 'scoped memory for forward.1']
    %8 = vsyncpa [#allocation3], 0
    // Predicated region
    $region2: #{forward.1} parent=1 // pred_check
      _
    $region3: #{forward.1} parent=1 // pred_check_branch
      %10 = sbr.rel (0) target = $region5
    $region4: #{forward.1} parent=1 // pred_region
      _
    $region5: #{forward.1} parent=1 // pred_fallthru
      _
    // Predicated region
    $region6: #{forward.1} parent=1 // pred_check
      _
    $region7: #{forward.1} parent=1 // pred_check_branch
      %12 = sbr.rel (0) target = $region9
    $region8: #{forward.1} parent=1 // pred_region
      _
    $region9: #{forward.1} parent=1 // pred_fallthru
      _
    // Predicated region
    $region10: #{forward.1} parent=1 // pred_check
      _
    $region11: #{forward.1} parent=1 // pred_check_branch
      %14 = sbr.rel (0) target = $region13
    $region12: #{forward.1} parent=1 // pred_region
      _
    $region13: #{forward.1} parent=1 // pred_fallthru
      _
    %v16 = vld [vmem:[%s1] sm:$0xf]
    %v17 = vld [vmem:[%s1 + $0x4] sm:$0xf]
    %v18 = vld [vmem:[%s1 + $0x8] sm:$0xf]
    %v19 = vld [vmem:[%s1 + $0xc] sm:$0xf]
    %v20 = vld [vmem:[%s1 + $0x10] sm:$0xf]
    %v21 = vld [vmem:[%s1 + $0x14] sm:$0xf]
    %v22 = vld [vmem:[%s1 + $0x18] sm:$0xf]
    %v23 = vld [vmem:[%s1 + $0x1c] sm:$0xf]
    %v24 = vld [vmem:[%s1 + $0x20] sm:$0xf]
    %v25 = vld [vmem:[%s1 + $0x24] sm:$0xf]
    %v26 = vld [vmem:[%s1 + $0x28] sm:$0xf]
    %v27 = vld [vmem:[%s1 + $0x2c] sm:$0xf]
    %v28 = vld [vmem:[%s1 + $0x30] sm:$0xf]
    %v29 = vld [vmem:[%s1 + $0x34] sm:$0xf]
    %v30 = vld [vmem:[%s1 + $0x38] sm:$0xf]
    %v31 = vld [vmem:[%s2] sm:$0x1]
    %v32 = vld [vmem:[%s2 + $0x1] sm:$0x1]
    %v33 = vld [vmem:[%s2 + $0x2] sm:$0x1]
    %v34 = vld [vmem:[%s2 + $0x3] sm:$0x1]
    %v35 = vld [vmem:[%s2 + $0x4] sm:$0x1]
    %v36 = vld [vmem:[%s2 + $0x5] sm:$0x1]
    %v37 = vld [vmem:[%s2 + $0x6] sm:$0x1]
    %v38 = vld [vmem:[%s2 + $0x8] sm:$0xff]
    %v39 = vld [vmem:[%s2 + $0x10] sm:$0xff]
    %v40 = vld [vmem:[%s0] sm:$0xf]
    %v41 = vld [vmem:[%s0 + $0x4] sm:$0xf]
    %v44 = vunpack.c.l.b16 %v40
    %v45 = vunpack.c.l.b16 %v41
    %v46 = vpack.c.b16 %v45, %v44
    %v50 = vunpack.c.l.b16 %v28
    %v51 = vunpack.c.l.b16 %v29
    %v52 = vunpack.c.l.b16 %v30
    %v53 = vpack.c.b16 %v51, %v50
    %v54 = vpack.c.b16 %v52, %v52
    %vm56 = vcmask 195584
    %v58 = vsel %vm56, %v46, 0
    %vm60 = vcmask 1043456
    %v62 = vsel %vm60, %v54, 0
    %64 = vmatprep.subr.bf16.mxu0 0
    %65 = vmatpush1.bf16.msra.mxu0 %v53
    %66 = vmatprep.subr.bf16.mxu0 0
    %67 = vmatpush1.bf16.msra.mxu0 %v62
    %68 = vmatprep.subr.bf16.mxu0 0
    %69 = vmatpush1.bf16.msra.mxu0 0
    %70 = vmatprep.subr.bf16.mxu0 0
    %71 = vmatpush1.bf16.msra.mxu0 0
    %72 = vmatprep.subr.bf16.mxu0 0
    %73 = vmatpush1.bf16.msra.mxu0 0
    %74 = vmatprep.subr.bf16.mxu0 0
    %75 = vmatpush1.bf16.msra.mxu0 0
    %76 = vmatprep.subr.bf16.mxu0 0
    %77 = vmatpush1.bf16.msra.mxu0 0
    %78 = vmatprep.subr.bf16.mxu0 0
    %79 = vmatpush1.bf16.msra.mxu0 0
    %80 = vmatprep.subr.bf16.mxu0 0
    %81 = vmatpush1.bf16.msra.mxu0 0
    %82 = vmatprep.subr.bf16.mxu0 0
    %83 = vmatpush1.bf16.msra.mxu0 0
    %84 = vmatprep.subr.bf16.mxu0 0
    %85 = vmatpush1.bf16.msra.mxu0 0
    %86 = vmatprep.subr.bf16.mxu0 0
    %87 = vmatpush1.bf16.msra.mxu0 0
    %88 = vmatprep.subr.bf16.mxu0 0
    %89 = vmatpush1.bf16.msra.mxu0 0
    %90 = vmatprep.subr.bf16.mxu0 0
    %91 = vmatpush1.bf16.msra.mxu0 0
    %92 = vmatprep.subr.bf16.mxu0 0
    %93 = vmatpush1.bf16.msra.mxu0 0
    %94 = vmatprep.subr.bf16.mxu0 0
    %95 = vmatpush1.bf16.msra.mxu0 0
    %96 = vmatprep.mubr.bf16.mxu0 0
    %97 = vmatmul.mubr.bf16.gmra.mrb[0].mxu0 %v58
    %v98 = vpop.f32.mrb[0].mxu0
    %v99 = vadd.f32 %v38, %v98
    %v100 = vpop.f32.mrb[0].mxu0
    %v101 = vpop.f32.mrb[0].mxu0
    %v102 = vadd.f32 %v39, %v101
    %v103 = vpop.f32.mrb[0].mxu0
    %104 = vdwg.mxu0
    %v105 = vpack.c.bf16 %v102, %v99
    %v106 = vlaneseq
    %v107 = vshrl.u32 %v106, 7
    %v108 = vsub.s32 0, %v107
    %v109 = vrot.slane %v31, %v108
    %v114 = vunpack.c.l.b16 %v16
    %v115 = vunpack.c.l.b16 %v17
    %v116 = vunpack.c.l.b16 %v18
    %v117 = vunpack.c.l.b16 %v19
    %v118 = vpack.c.b16 %v115, %v114
    %v119 = vpack.c.b16 %v117, %v116
    %vm122 = vcmask 261120
    %v124 = vsel %vm122, %v105, 0
    %126 = vmatprep.subr.bf16.mxu0 0
    %127 = vmatpush1.bf16.msra.mxu0 %v118
    %128 = vmatprep.subr.bf16.mxu0 0
    %129 = vmatpush1.bf16.msra.mxu0 %v119
    %130 = vmatprep.subr.bf16.mxu0 0
    %131 = vmatpush1.bf16.msra.mxu0 0
    %132 = vmatprep.subr.bf16.mxu0 0
    %133 = vmatpush1.bf16.msra.mxu0 0
    %134 = vmatprep.subr.bf16.mxu0 0
    %135 = vmatpush1.bf16.msra.mxu0 0
    %136 = vmatprep.subr.bf16.mxu0 0
    %137 = vmatpush1.bf16.msra.mxu0 0
    %138 = vmatprep.subr.bf16.mxu0 0
    %139 = vmatpush1.bf16.msra.mxu0 0
    %140 = vmatprep.subr.bf16.mxu0 0
    %141 = vmatpush1.bf16.msra.mxu0 0
    %142 = vmatprep.subr.bf16.mxu0 0
    %143 = vmatpush1.bf16.msra.mxu0 0
    %144 = vmatprep.subr.bf16.mxu0 0
    %145 = vmatpush1.bf16.msra.mxu0 0
    %146 = vmatprep.subr.bf16.mxu0 0
    %147 = vmatpush1.bf16.msra.mxu0 0
    %148 = vmatprep.subr.bf16.mxu0 0
    %149 = vmatpush1.bf16.msra.mxu0 0
    %150 = vmatprep.subr.bf16.mxu0 0
    %151 = vmatpush1.bf16.msra.mxu0 0
    %152 = vmatprep.subr.bf16.mxu0 0
    %153 = vmatpush1.bf16.msra.mxu0 0
    %154 = vmatprep.subr.bf16.mxu0 0
    %155 = vmatpush1.bf16.msra.mxu0 0
    %156 = vmatprep.subr.bf16.mxu0 0
    %157 = vmatpush1.bf16.msra.mxu0 0
    %158 = vmatprep.mubr.bf16.mxu0 0
    %159 = vmatmul.mubr.bf16.gmra.mrb[0].mxu0 %v124
    %v160 = vpop.f32.mrb[0].mxu0
    %v161 = vadd.f32 %v109, %v160
    %v162 = vpop.f32.mrb[0].mxu0
    %v163 = vpop.f32.mrb[0].mxu0
    %v164 = vadd.f32 %v109, %v163
    %v165 = vpop.f32.mrb[0].mxu0
    %166 = vdwg.mxu0
    %v167 = vlaneseq
    %v168 = vshrl.u32 %v167, 7
    %v169 = vadd.s32 %v168, 8
    %v170 = vlaneseq
    %v171 = vand.u32 %v170, 127
    %vm172 = vcmp.lt.s32.totalorder %v168, 0
    %v173 = vsub.s32 0, %v168
    %v174 = vsel %vm172, %v173, %v168
    %v175 = vshrl.u32 %v174, 1
    %v176 = vand.u32 %v174, 1
    %v177 = vsub.s32 0, %v176
    %v178 = vsel %vm172, %v177, %v176
    %vm179 = vcmp.lt.s32.totalorder %v169, 0
    %v180 = vsub.s32 0, %v169
    %v181 = vsel %vm179, %v180, %v169
    %v182 = vshrl.u32 %v181, 1
    %v183 = vand.u32 %v181, 1
    %v184 = vsub.s32 0, %v183
    %v185 = vsel %vm179, %v184, %v183
    %vm186 = vcmp.ne.s32.totalorder %v178, 0
    %vm187 = vcmp.ne.s32.totalorder %v185, 0
    %vm188 = vcmp.lt.s32.totalorder %v178, 0
    %vm189 = vcmp.lt.s32.totalorder %v185, 0
    %vm190 = vmand %vm188, %vm186
    %vm191 = vmand %vm189, %vm187
    %v192 = vadd.s32 %v178, 2
    %v193 = vadd.s32 %v185, 2
    %v194 = vsel %vm190, %v192, %v178
    %v195 = vsel %vm191, %v193, %v185
    %v196 = vsub.s32 %v168, %v194
    %v197 = vsub.s32 %v169, %v195
    %vm198 = vcmp.eq.s32.totalorder %v171, %v196
    %vm199 = vcmp.eq.s32.totalorder %v171, %v197
    %v200 = vsel %vm198, 1, 0
    %v201 = vsel %vm199, 1, 0
    %v202 = vcvt.s32.f32 %v200
    %v203 = vcvt.s32.f32 %v201
    %206 = vrot.lane.b32.xlu0 %v161, 96
    %v207 = vpop.permute.xlu0 %206
    %208 = vrot.lane.b32.xlu0 %v164, 96
    %v209 = vpop.permute.xlu0 %208
    %vm212 = vcmask 130048
    %v214 = vsel %vm212, %v202, 0
    %v217 = vsel %vm212, %v203, 0
    %219 = vmatprep.subr.mxu0 0.0
    %220 = vmatpush1.msra.mxu0 %v207
    %221 = vmatprep.subr.mxu0 0.0
    %222 = vmatpush1.msra.mxu0 %v209
    %223 = vmatprep.subr.mxu0 0.0
    %224 = vmatpush1.msra.mxu0 0.0
    %225 = vmatprep.subr.mxu0 0.0
    %226 = vmatpush1.msra.mxu0 0.0
    %227 = vmatprep.subr.mxu0 0.0
    %228 = vmatpush1.msra.mxu0 0.0
    %229 = vmatprep.subr.mxu0 0.0
    %230 = vmatpush1.msra.mxu0 0.0
    %231 = vmatprep.subr.mxu0 0.0
    %232 = vmatpush1.msra.mxu0 0.0
    %233 = vmatprep.subr.mxu0 0.0
    %234 = vmatpush1.msra.mxu0 0.0
    %235 = vmatprep.subr.mxu0 0.0
    %236 = vmatpush1.msra.mxu0 0.0
    %237 = vmatprep.subr.mxu0 0.0
    %238 = vmatpush1.msra.mxu0 0.0
    %239 = vmatprep.subr.mxu0 0.0
    %240 = vmatpush1.msra.mxu0 0.0
    %241 = vmatprep.subr.mxu0 0.0
    %242 = vmatpush1.msra.mxu0 0.0
    %243 = vmatprep.subr.mxu0 0.0
    %244 = vmatpush1.msra.mxu0 0.0
    %245 = vmatprep.subr.mxu0 0.0
    %246 = vmatpush1.msra.mxu0 0.0
    %247 = vmatprep.subr.mxu0 0.0
    %248 = vmatpush1.msra.mxu0 0.0
    %249 = vmatprep.subr.mxu0 0.0
    %250 = vmatpush1.msra.mxu0 0.0
    %251 = vmatprep.subr.mxu0 0.0
    %252 = vmatpush1.msra.mxu0 0.0
    %253 = vmatprep.subr.mxu0 0.0
    %254 = vmatpush1.msra.mxu0 0.0
    %255 = vmatprep.subr.mxu0 0.0
    %256 = vmatpush1.msra.mxu0 0.0
    %257 = vmatprep.subr.mxu0 0.0
    %258 = vmatpush1.msra.mxu0 0.0
    %259 = vmatprep.subr.mxu0 0.0
    %260 = vmatpush1.msra.mxu0 0.0
    %261 = vmatprep.subr.mxu0 0.0
    %262 = vmatpush1.msra.mxu0 0.0
    %263 = vmatprep.subr.mxu0 0.0
    %264 = vmatpush1.msra.mxu0 0.0
    %265 = vmatprep.subr.mxu0 0.0
    %266 = vmatpush1.msra.mxu0 0.0
    %267 = vmatprep.subr.mxu0 0.0
    %268 = vmatpush1.msra.mxu0 0.0
    %269 = vmatprep.subr.mxu0 0.0
    %270 = vmatpush1.msra.mxu0 0.0
    %271 = vmatprep.subr.mxu0 0.0
    %272 = vmatpush1.msra.mxu0 0.0
    %273 = vmatprep.subr.mxu0 0.0
    %274 = vmatpush1.msra.mxu0 0.0
    %275 = vmatprep.subr.mxu0 0.0
    %276 = vmatpush1.msra.mxu0 0.0
    %277 = vmatprep.subr.mxu0 0.0
    %278 = vmatpush1.msra.mxu0 0.0
    %279 = vmatprep.subr.mxu0 0.0
    %280 = vmatpush1.msra.mxu0 0.0
    %281 = vmatprep.subr.mxu0 0.0
    %282 = vmatpush1.msra.mxu0 0.0
    %283 = vmatprep.mubr.f32.mxu0 0.0
    %284 = vmatmul.mubr.f32.gmra.mrb[0].mxu0 %v214
    %v285 = vpop.f32.mrb[0].mxu0
    %v286 = vadd.f32 0.0, %v285
    %v287 = vpop.f32.mrb[0].mxu0
    %288 = vmatprep.mubr.f32.mxu0 0.0
    %289 = vmatmul.mubr.f32.gmra.mrb[0].mxu0 %v217
    %v290 = vpop.f32.mrb[0].mxu0
    %v291 = vadd.f32 0.0, %v290
    %v292 = vpop.f32.mrb[0].mxu0
    %293 = vdwg.mxu0
    %294 = vrot.lane.b32.xlu0 %v161, 64
    %v295 = vpop.permute.xlu0 %294
    %296 = vrot.lane.b32.xlu0 %v164, 64
    %v297 = vpop.permute.xlu0 %296
    %300 = vmatprep.subr.mxu0 0.0
    %301 = vmatpush1.msra.mxu0 %v295
    %302 = vmatprep.subr.mxu0 0.0
    %303 = vmatpush1.msra.mxu0 %v297
    %304 = vmatprep.subr.mxu0 0.0
    %305 = vmatpush1.msra.mxu0 0.0
    %306 = vmatprep.subr.mxu0 0.0
    %307 = vmatpush1.msra.mxu0 0.0
    %308 = vmatprep.subr.mxu0 0.0
    %309 = vmatpush1.msra.mxu0 0.0
    %310 = vmatprep.subr.mxu0 0.0
    %311 = vmatpush1.msra.mxu0 0.0
    %312 = vmatprep.subr.mxu0 0.0
    %313 = vmatpush1.msra.mxu0 0.0
    %314 = vmatprep.subr.mxu0 0.0
    %315 = vmatpush1.msra.mxu0 0.0
    %316 = vmatprep.subr.mxu0 0.0
    %317 = vmatpush1.msra.mxu0 0.0
    %318 = vmatprep.subr.mxu0 0.0
    %319 = vmatpush1.msra.mxu0 0.0
    %320 = vmatprep.subr.mxu0 0.0
    %321 = vmatpush1.msra.mxu0 0.0
    %322 = vmatprep.subr.mxu0 0.0
    %323 = vmatpush1.msra.mxu0 0.0
    %324 = vmatprep.subr.mxu0 0.0
    %325 = vmatpush1.msra.mxu0 0.0
    %326 = vmatprep.subr.mxu0 0.0
    %327 = vmatpush1.msra.mxu0 0.0
    %328 = vmatprep.subr.mxu0 0.0
    %329 = vmatpush1.msra.mxu0 0.0
    %330 = vmatprep.subr.mxu0 0.0
    %331 = vmatpush1.msra.mxu0 0.0
    %332 = vmatprep.subr.mxu0 0.0
    %333 = vmatpush1.msra.mxu0 0.0
    %334 = vmatprep.subr.mxu0 0.0
    %335 = vmatpush1.msra.mxu0 0.0
    %336 = vmatprep.subr.mxu0 0.0
    %337 = vmatpush1.msra.mxu0 0.0
    %338 = vmatprep.subr.mxu0 0.0
    %339 = vmatpush1.msra.mxu0 0.0
    %340 = vmatprep.subr.mxu0 0.0
    %341 = vmatpush1.msra.mxu0 0.0
    %342 = vmatprep.subr.mxu0 0.0
    %343 = vmatpush1.msra.mxu0 0.0
    %344 = vmatprep.subr.mxu0 0.0
    %345 = vmatpush1.msra.mxu0 0.0
    %346 = vmatprep.subr.mxu0 0.0
    %347 = vmatpush1.msra.mxu0 0.0
    %348 = vmatprep.subr.mxu0 0.0
    %349 = vmatpush1.msra.mxu0 0.0
    %350 = vmatprep.subr.mxu0 0.0
    %351 = vmatpush1.msra.mxu0 0.0
    %352 = vmatprep.subr.mxu0 0.0
    %353 = vmatpush1.msra.mxu0 0.0
    %354 = vmatprep.subr.mxu0 0.0
    %355 = vmatpush1.msra.mxu0 0.0
    %356 = vmatprep.subr.mxu0 0.0
    %357 = vmatpush1.msra.mxu0 0.0
    %358 = vmatprep.subr.mxu0 0.0
    %359 = vmatpush1.msra.mxu0 0.0
    %360 = vmatprep.subr.mxu0 0.0
    %361 = vmatpush1.msra.mxu0 0.0
    %362 = vmatprep.subr.mxu0 0.0
    %363 = vmatpush1.msra.mxu0 0.0
    %364 = vmatprep.mubr.f32.mxu0 0.0
    %365 = vmatmul.mubr.f32.gmra.mrb[0].mxu0 %v214
    %v366 = vpop.f32.mrb[0].mxu0
    %v367 = vadd.f32 0.0, %v366
    %v368 = vpop.f32.mrb[0].mxu0
    %369 = vmatprep.mubr.f32.mxu0 0.0
    %370 = vmatmul.mubr.f32.gmra.mrb[0].mxu0 %v217
    %v371 = vpop.f32.mrb[0].mxu0
    %v372 = vadd.f32 0.0, %v371
    %v373 = vpop.f32.mrb[0].mxu0
    %374 = vdwg.mxu0
    %377 = vrot.lane.b32.xlu0 %v286, 32
    %v378 = vpop.permute.xlu0 %377
    %379 = vrot.lane.b32.xlu0 %v291, 32
    %v380 = vpop.permute.xlu0 %379
    %v383 = vsub.f32 %v161, %v378
    %v384 = vsub.f32 %v164, %v380
    %387 = vrot.lane.b32.xlu0 %v383, 96
    %v388 = vpop.permute.xlu0 %387
    %389 = vrot.lane.b32.xlu0 %v384, 96
    %v390 = vpop.permute.xlu0 %389
    %v393 = vmul.f32 %v161, %v388
    %v394 = vmul.f32 %v164, %v390
    %v395 = vxor.u32 %v393, 2147483648
    %v396 = vxor.u32 %v394, 2147483648
    %v397 = vmul.f32 %v395, 1.442695
    %v398 = vpow.pop %v397
    %v399 = vmul.f32 %v396, 1.442695
    %v400 = vpow.pop %v399
    %v401 = vadd.f32 %v398, 1.0
    %v402 = vadd.f32 %v400, 1.0
    %v403 = vrcp.pop %v401
    %v404 = vmul.f32 1.0, %v403
    %v405 = vrcp.pop %v402
    %v406 = vmul.f32 1.0, %v405
    %409 = vrot.lane.b32.xlu0 %v367, 64
    %v410 = vpop.permute.xlu0 %409
    %411 = vrot.lane.b32.xlu0 %v372, 64
    %v412 = vpop.permute.xlu0 %411
    %v415 = vsub.f32 %v161, %v410
    %v416 = vsub.f32 %v164, %v412
    %419 = vrot.lane.b32.xlu0 %v415, 64
    %v420 = vpop.permute.xlu0 %419
    %421 = vrot.lane.b32.xlu0 %v416, 64
    %v422 = vpop.permute.xlu0 %421
    %v425 = vmul.f32 %v404, %v420
    %v426 = vmul.f32 %v406, %v422
    %v427 = vadd.f32 %v367, %v425
    %v428 = vadd.f32 %v372, %v426
    %v429 = vpack.c.bf16 %v428, %v427
    %v430 = vlaneseq
    %v431 = vshrl.u32 %v430, 7
    %v432 = vsub.s32 0, %v431
    %v433 = vrot.slane %v32, %v432
    %v438 = vunpack.c.l.b16 %v20
    %v439 = vunpack.c.l.b16 %v21
    %v440 = vunpack.c.l.b16 %v22
    %v441 = vunpack.c.l.b16 %v23
    %v442 = vpack.c.b16 %v439, %v438
    %v443 = vpack.c.b16 %v441, %v440
    %v447 = vsel %vm122, %v429, 0
    %449 = vmatprep.subr.bf16.mxu0 0
    %450 = vmatpush1.bf16.msra.mxu0 %v442
    %451 = vmatprep.subr.bf16.mxu0 0
    %452 = vmatpush1.bf16.msra.mxu0 %v443
    %453 = vmatprep.subr.bf16.mxu0 0
    %454 = vmatpush1.bf16.msra.mxu0 0
    %455 = vmatprep.subr.bf16.mxu0 0
    %456 = vmatpush1.bf16.msra.mxu0 0
    %457 = vmatprep.subr.bf16.mxu0 0
    %458 = vmatpush1.bf16.msra.mxu0 0
    %459 = vmatprep.subr.bf16.mxu0 0
    %460 = vmatpush1.bf16.msra.mxu0 0
    %461 = vmatprep.subr.bf16.mxu0 0
    %462 = vmatpush1.bf16.msra.mxu0 0
    %463 = vmatprep.subr.bf16.mxu0 0
    %464 = vmatpush1.bf16.msra.mxu0 0
    %465 = vmatprep.subr.bf16.mxu0 0
    %466 = vmatpush1.bf16.msra.mxu0 0
    %467 = vmatprep.subr.bf16.mxu0 0
    %468 = vmatpush1.bf16.msra.mxu0 0
    %469 = vmatprep.subr.bf16.mxu0 0
    %470 = vmatpush1.bf16.msra.mxu0 0
    %471 = vmatprep.subr.bf16.mxu0 0
    %472 = vmatpush1.bf16.msra.mxu0 0
    %473 = vmatprep.subr.bf16.mxu0 0
    %474 = vmatpush1.bf16.msra.mxu0 0
    %475 = vmatprep.subr.bf16.mxu0 0
    %476 = vmatpush1.bf16.msra.mxu0 0
    %477 = vmatprep.subr.bf16.mxu0 0
    %478 = vmatpush1.bf16.msra.mxu0 0
    %479 = vmatprep.subr.bf16.mxu0 0
    %480 = vmatpush1.bf16.msra.mxu0 0
    %481 = vmatprep.mubr.bf16.mxu0 0
    %482 = vmatmul.mubr.bf16.gmra.mrb[0].mxu0 %v447
    %v483 = vpop.f32.mrb[0].mxu0
    %v484 = vadd.f32 %v433, %v483
    %v485 = vpop.f32.mrb[0].mxu0
    %v486 = vpop.f32.mrb[0].mxu0
    %v487 = vadd.f32 %v433, %v486
    %v488 = vpop.f32.mrb[0].mxu0
    %489 = vdwg.mxu0
    %v490 = vadd.f32 %v99, %v484
    %v491 = vadd.f32 %v102, %v487
    %v492 = vsel %vm122, %v490, 0.0
    %493 = vadd.xlane.f32.xlu0 %v492
    %v494 = vpop.xlane.xlu0 %493
    %v495 = vsel %vm122, %v491, 0.0
    %496 = vadd.xlane.f32.xlu0 %v495
    %v497 = vpop.xlane.xlu0 %496
    %v498 = vrcp.pop 32.0
    %v499 = vmul.f32 %v494, %v498
    %v500 = vmul.f32 %v497, %v498
    %v501 = vsub.f32 %v490, %v499
    %v502 = vsub.f32 %v491, %v500
    %v503 = vmul.f32 %v501, %v501
    %v504 = vmul.f32 %v502, %v502
    %v505 = vsel %vm122, %v503, 0.0
    %506 = vadd.xlane.f32.xlu0 %v505
    %v507 = vpop.xlane.xlu0 %506
    %v508 = vsel %vm122, %v504, 0.0
    %509 = vadd.xlane.f32.xlu0 %v508
    %v510 = vpop.xlane.xlu0 %509
    %v511 = vmul.f32 %v507, %v498
    %v512 = vmul.f32 %v510, %v498
    %v513 = vadd.f32 %v511, 1e-05
    %v514 = vadd.f32 %v512, 1e-05
    %v515 = vrsqrt.pop %v513
    %v516 = vrsqrt.pop %v514
    %v517 = vmul.f32 %v501, %v515
    %v518 = vmul.f32 %v502, %v516
    %v519 = vlaneseq
    %v520 = vshrl.u32 %v519, 7
    %v521 = vsub.s32 0, %v520
    %v522 = vrot.slane %v34, %v521
    %v523 = vmul.f32 %v517, %v522
    %v524 = vmul.f32 %v518, %v522
    %v525 = vlaneseq
    %v526 = vshrl.u32 %v525, 7
    %v527 = vsub.s32 0, %v526
    %v528 = vrot.slane %v35, %v527
    %v529 = vadd.f32 %v523, %v528
    %v530 = vadd.f32 %v524, %v528
    %v531 = vpack.c.bf16 %v530, %v529
    %v532 = vlaneseq
    %v533 = vshrl.u32 %v532, 7
    %v534 = vsub.s32 0, %v533
    %v535 = vrot.slane %v33, %v534
    %v540 = vunpack.c.l.b16 %v24
    %v541 = vunpack.c.l.b16 %v25
    %v542 = vunpack.c.l.b16 %v26
    %v543 = vunpack.c.l.b16 %v27
    %v544 = vpack.c.b16 %v541, %v540
    %v545 = vpack.c.b16 %v543, %v542
    %v549 = vsel %vm122, %v531, 0
    %551 = vmatprep.subr.bf16.mxu0 0
    %552 = vmatpush1.bf16.msra.mxu0 %v544
    %553 = vmatprep.subr.bf16.mxu0 0
    %554 = vmatpush1.bf16.msra.mxu0 %v545
    %555 = vmatprep.subr.bf16.mxu0 0
    %556 = vmatpush1.bf16.msra.mxu0 0
    %557 = vmatprep.subr.bf16.mxu0 0
    %558 = vmatpush1.bf16.msra.mxu0 0
    %559 = vmatprep.subr.bf16.mxu0 0
    %560 = vmatpush1.bf16.msra.mxu0 0
    %561 = vmatprep.subr.bf16.mxu0 0
    %562 = vmatpush1.bf16.msra.mxu0 0
    %563 = vmatprep.subr.bf16.mxu0 0
    %564 = vmatpush1.bf16.msra.mxu0 0
    %565 = vmatprep.subr.bf16.mxu0 0
    %566 = vmatpush1.bf16.msra.mxu0 0
    %567 = vmatprep.subr.bf16.mxu0 0
    %568 = vmatpush1.bf16.msra.mxu0 0
    %569 = vmatprep.subr.bf16.mxu0 0
    %570 = vmatpush1.bf16.msra.mxu0 0
    %571 = vmatprep.subr.bf16.mxu0 0
    %572 = vmatpush1.bf16.msra.mxu0 0
    %573 = vmatprep.subr.bf16.mxu0 0
    %574 = vmatpush1.bf16.msra.mxu0 0
    %575 = vmatprep.subr.bf16.mxu0 0
    %576 = vmatpush1.bf16.msra.mxu0 0
    %577 = vmatprep.subr.bf16.mxu0 0
    %578 = vmatpush1.bf16.msra.mxu0 0
    %579 = vmatprep.subr.bf16.mxu0 0
    %580 = vmatpush1.bf16.msra.mxu0 0
    %581 = vmatprep.subr.bf16.mxu0 0
    %582 = vmatpush1.bf16.msra.mxu0 0
    %583 = vmatprep.mubr.bf16.mxu0 0
    %584 = vmatmul.mubr.bf16.gmra.mrb[0].mxu0 %v549
    %v585 = vpop.f32.mrb[0].mxu0
    %v586 = vadd.f32 %v535, %v585
    %v587 = vpop.f32.mrb[0].mxu0
    %v588 = vpop.f32.mrb[0].mxu0
    %v589 = vadd.f32 %v535, %v588
    %v590 = vpop.f32.mrb[0].mxu0
    %591 = vdwg.mxu0
    %v592 = vadd.f32 %v529, %v586
    %v593 = vadd.f32 %v530, %v589
    %v594 = vsel %vm122, %v592, 0.0
    %595 = vadd.xlane.f32.xlu0 %v594
    %v596 = vpop.xlane.xlu0 %595
    %v597 = vsel %vm122, %v593, 0.0
    %598 = vadd.xlane.f32.xlu0 %v597
    %v599 = vpop.xlane.xlu0 %598
    %v600 = vmul.f32 %v596, %v498
    %v601 = vmul.f32 %v599, %v498
    %v602 = vsub.f32 %v592, %v600
    %v603 = vsub.f32 %v593, %v601
    %v604 = vmul.f32 %v602, %v602
    %v605 = vmul.f32 %v603, %v603
    %v606 = vsel %vm122, %v604, 0.0
    %607 = vadd.xlane.f32.xlu0 %v606
    %v608 = vpop.xlane.xlu0 %607
    %v609 = vsel %vm122, %v605, 0.0
    %610 = vadd.xlane.f32.xlu0 %v609
    %v611 = vpop.xlane.xlu0 %610
    %v612 = vmul.f32 %v608, %v498
    %v613 = vmul.f32 %v611, %v498
    %v614 = vadd.f32 %v612, 1e-05
    %v615 = vadd.f32 %v613, 1e-05
    %v616 = vrsqrt.pop %v614
    %v617 = vrsqrt.pop %v615
    %v618 = vmul.f32 %v602, %v616
    %v619 = vmul.f32 %v603, %v617
    %v620 = vlaneseq
    %v621 = vshrl.u32 %v620, 7
    %v622 = vsub.s32 0, %v621
    %v623 = vrot.slane %v36, %v622
    %v624 = vmul.f32 %v618, %v623
    %v625 = vmul.f32 %v619, %v623
    %v626 = vlaneseq
    %v627 = vshrl.u32 %v626, 7
    %v628 = vsub.s32 0, %v627
    %v629 = vrot.slane %v37, %v628
    %v630 = vadd.f32 %v624, %v629
    %v631 = vadd.f32 %v625, %v629
    %632 = vst.msk [vmem:[#allocation2] sm:$0xff] %vm122, %v630
    %633 = vst.msk [vmem:[#allocation2 + $0x8] sm:$0xff] %vm122, %v631
    // Predicated region
    $region14: #{forward.1} parent=1 // pred_check
      _
    $region15: #{forward.1} parent=1 // pred_check_branch
      %635 = sbr.rel (0) target = $region17
    $region16: #{forward.1} parent=1 // pred_region
      %s637 = ssub.s32 256, 256
      %638 = vsyncadd [#allocation3], %s637
      %s639 = sshll.u32 [#allocation2], 4
      %s640 = int_to_ptr.vmem [resolvable:$true] %s639
      %645 = dma.vmem_to_hbm [thread:$0]  %s640, 256, %s3, [#allocation3], 128, 128, 8
    $region17: #{forward.1} parent=1 // pred_fallthru
      _
    // Predicated region
    $region18: #{forward.1} parent=1 // pred_check
      _
    $region19: #{forward.1} parent=1 // pred_check_branch
      %647 = sbr.rel (0) target = $region21
    $region20: #{forward.1} parent=1 // pred_region
      %648 = dma.done [#allocation3], 256
    $region21: #{forward.1} parent=1 // pred_fallthru
      _
    %649 = vsyncpa [#allocation3], 1

</llo_original>
